<compile_context>
chip_gen: v7x
topology: tpu7x:2x2x1
jax: 0.10.0
libtpu: 0.0.40
codegen_flags: <defaults>
</compile_context>

<pallas_src>
import functools

import jax
import jax.numpy as jnp
from jax import lax
from jax.experimental import pallas as pl
from jax.experimental.pallas import tpu as pltpu


def _round_up(v: int, m: int) -> int:
    return ((v + m - 1) // m) * m


# --------------------------------------------------------------------------- #
# Pallas kernel: fused matmul (bf16 MXU, f32 accumulate) + bias + optional ReLU
# --------------------------------------------------------------------------- #
def _mm_bias_act_kernel(x_ref, w_ref, b_ref, o_ref, *, relu: bool):
    # bf16 x bf16 -> f32 accumulator on the MXU.
    acc = jnp.dot(x_ref[...], w_ref[...], preferred_element_type=jnp.float32)
    acc = acc + b_ref[...]                 # (1, Np) broadcasts over rows, f32
    if relu:
        acc = jnp.maximum(acc, 0.0)
    o_ref[...] = acc.astype(o_ref.dtype)   # single cast at the store


def matmul_bias(x, w, b, *, relu: bool, out_dtype=jnp.float32, tm: int = 512):
    """x: (M, K), w: (K, N), b: (N,) -> (M, N) in out_dtype.

    Grid over M row-tiles; K and (128-padded) N are kept whole so the weight stays
    resident in VMEM across all row tiles.
    """
    M, K = x.shape
    K2, N = w.shape
    assert K == K2

    # Lane-dense output: pad N up to a multiple of 128.
    n_pad = _round_up(N, 128)
    # Row tile: multiple of 8 sublanes; pad M up to a whole number of tiles.
    tm_eff = min(tm, _round_up(M, 8))
    m_pad = _round_up(M, tm_eff)

    xb = x.astype(jnp.bfloat16)
    if m_pad != M:
        xb = jnp.pad(xb, ((0, m_pad - M), (0, 0)))
    wb = w.astype(jnp.bfloat16)
    bf = b.astype(jnp.float32).reshape(1, N)
    if n_pad != N:
        wb = jnp.pad(wb, ((0, 0), (0, n_pad - N)))
        bf = jnp.pad(bf, ((0, 0), (0, n_pad - N)))

    grid = (m_pad // tm_eff,)
    kernel = functools.partial(_mm_bias_act_kernel, relu=relu)

    out = pl.pallas_call(
        kernel,
        out_shape=jax.ShapeDtypeStruct((m_pad, n_pad), out_dtype),
        grid=grid,
        in_specs=[
            pl.BlockSpec((tm_eff, K), lambda i: (i, 0)),   # patch tile, pipelined over M
            pl.BlockSpec((K, n_pad), lambda i: (0, 0)),    # weight: resident in VMEM
            pl.BlockSpec((1, n_pad), lambda i: (0, 0)),    # bias: resident
        ],
        out_specs=pl.BlockSpec((tm_eff, n_pad), lambda i: (i, 0)),
        compiler_params=pltpu.CompilerParams(
            dimension_semantics=("parallel",),             # shard M tiles across TCs (v7x)
            vmem_limit_bytes=48 * 1024 * 1024,             # headroom vs v7x 64 MiB physical
        ),
    )(xb, wb, bf)
    return out[:M, :N]


# --------------------------------------------------------------------------- #
# Plain-JAX glue: channel-last im2col (static 3x3 window, stride 2)
# --------------------------------------------------------------------------- #
def im2col_nhwc(x, kh, kw, stride):
    """x: (B, H, W, C) -> (B*Ho*Wo, kh*kw*C) with feature order (kh, kw, c)."""
    b, h, w, c = x.shape
    ho = (h - kh) // stride + 1
    wo = (w - kw) // stride + 1
    cols = []
    for i in range(kh):
        for j in range(kw):
            cols.append(
                x[:, i:i + stride * (ho - 1) + 1:stride,
                     j:j + stride * (wo - 1) + 1:stride, :]
            )
    p = jnp.stack(cols, axis=3)                       # (b, ho, wo, kh*kw, c)
    p = p.reshape(b * ho * wo, kh * kw * c)
    return p, ho, wo


# --------------------------------------------------------------------------- #
# Forward pass (matches torch Conv2dSubsampling.forward exactly)
# --------------------------------------------------------------------------- #
def conv2d_subsampling_forward(x, params, odim):
    """x: (B, T, idim) float32 -> (B, T', odim), T' = ((T-1)//2 - 1)//2."""
    b, t, f = x.shape

    # ---- conv1 (1 -> odim, k=3, s=2) + ReLU, channel-last layout ----
    x4 = x[:, :, :, None]                             # (b, t, f, 1)
    p1, h1, w1o = im2col_nhwc(x4, 3, 3, 2)            # (b*h1*w1, 9)
    w1m = params["w1"].transpose(2, 3, 1, 0).reshape(9, odim)       # (kh,kw,ci) x O
    y1 = matmul_bias(p1, w1m, params["b1"], relu=True, out_dtype=jnp.bfloat16)
    y1 = y1.reshape(b, h1, w1o, odim)                 # NHWC, lane dim = channels

    # ---- conv2 (odim -> odim, k=3, s=2) + ReLU ----
    p2, h2, w2o = im2col_nhwc(y1, 3, 3, 2)            # (b*h2*w2, 9*odim), bf16
    w2m = params["w2"].transpose(2, 3, 1, 0).reshape(9 * odim, odim)
    y2 = matmul_bias(p2, w2m, params["b2"], relu=True, out_dtype=jnp.bfloat16)

    # ---- Linear(odim*f' -> odim) ----
    # y2 rows are ordered (b, h2, w2) with lane dim = channel -> per (b, t') row the
    # features flatten as (f', c).  Torch's Linear expects (c, f'); fold that interleave
    # into a one-time permutation of the weight instead of transposing the activation.
    y2 = y2.reshape(b * h2, w2o * odim)
    wo_perm = (params["wo"]                           # (odim_out, odim*fdim), cols (c, f')
               .reshape(odim, odim, w2o)              # (o, c, f')
               .transpose(2, 1, 0)                    # (f', c, o)
               .reshape(w2o * odim, odim))            # rows ordered (f', c)
    out = matmul_bias(y2, wo_perm, params["bo"], relu=False, out_dtype=jnp.float32)
    return out.reshape(b, h2, odim)


# --------------------------------------------------------------------------- #
# Pure-JAX reference (lax.conv, f32, exact torch ordering) for verification
# --------------------------------------------------------------------------- #
def reference_forward(x, params):
    x4 = x[:, None, :, :]
    y = lax.conv_general_dilated(x4, params["w1"], (2, 2), "VALID",
                                 dimension_numbers=("NCHW", "OIHW", "NCHW"))
    y = jnp.maximum(y + params["b1"][None, :, None, None], 0.0)
    y = lax.conv_general_dilated(y, params["w2"], (2, 2), "VALID",
                                 dimension_numbers=("NCHW", "OIHW", "NCHW"))
    y = jnp.maximum(y + params["b2"][None, :, None, None], 0.0)
    b, c, t, f = y.shape
    y = y.transpose(0, 2, 1, 3).reshape(b, t, c * f)
    return y @ params["wo"].T + params["bo"]


# --------------------------------------------------------------------------- #
def init_params(key, idim, odim):
    fdim = ((idim - 1) // 2 - 1) // 2
    k1, k2, k3, k4, k5, k6 = jax.random.split(key, 6)
    return {
        "w1": 0.1 * jax.random.normal(k1, (odim, 1, 3, 3), jnp.float32),
        "b1": 0.1 * jax.random.normal(k2, (odim,), jnp.float32),
        "w2": 0.1 * jax.random.normal(k3, (odim, odim, 3, 3), jnp.float32),
        "b2": 0.1 * jax.random.normal(k4, (odim,), jnp.float32),
        "wo": 0.1 * jax.random.normal(k5, (odim, odim * fdim), jnp.float32),
        "bo": 0.1 * jax.random.normal(k6, (odim,), jnp.float32),
    }


if __name__ == "__main__":
    B, T, IDIM, ODIM = 2, 16, 16, 32          # idim >= 7 as asserted by the module
    key = jax.random.PRNGKey(0)
    kx, kp = jax.random.split(key)
    x = jax.random.normal(kx, (B, T, IDIM), jnp.float32)
    params = init_params(kp, IDIM, ODIM)

    fwd = jax.jit(conv2d_subsampling_forward, static_argnums=(2,))
    out = fwd(x, params, ODIM)
    out = jax.block_until_ready(out)

    ref = reference_forward(x, params)
    t_out = ((T - 1) // 2 - 1) // 2
    assert out.shape == (B, t_out, ODIM), out.shape
    # bf16 MXU path with f32 accumulation vs f32 reference -> loose tolerance.
    max_err = float(jnp.max(jnp.abs(out - ref)))
    assert max_err < 5e-2, max_err

    print("KERNEL_OK")
</pallas_src>

<mosaic_0001>
module attributes {stable_mosaic.version = 11 : i64} {
  func.func @_mm_bias_act_kernel(%arg0: i32, %arg1: memref<104x9xbf16, #tpu.memory_space<vmem>>, %arg2: memref<9x128xbf16, #tpu.memory_space<vmem>>, %arg3: memref<1x128xf32, #tpu.memory_space<vmem>>, %arg4: memref<104x128xbf16, #tpu.memory_space<vmem>>) attributes {dimension_semantics = [#tpu.dimension_semantics<parallel>], iteration_bounds = array<i64: 1>, scalar_prefetch = 0 : i64, scratch_operands = 0 : i64, tpu.core_type = #tpu.core_type<tc>, window_params = [{transform_indices = @transform_0, window_bounds = array<i64: 104, 9>}, {pipeline_mode = #tpu.pipeline_mode<synchronous>, transform_indices = @transform_1, window_bounds = array<i64: 9, 128>}, {pipeline_mode = #tpu.pipeline_mode<synchronous>, transform_indices = @transform_2, window_bounds = array<i64: 1, 128>}, {transform_indices = @transform_3, window_bounds = array<i64: 104, 128>}]} {
    %c0 = arith.constant 0 : index
    %c0_0 = arith.constant 0 : index
    %0 = vector.load %arg1[%c0, %c0_0] : memref<104x9xbf16, #tpu.memory_space<vmem>>, vector<104x9xbf16>
    %c0_1 = arith.constant 0 : index
    %c0_2 = arith.constant 0 : index
    %1 = vector.load %arg2[%c0_1, %c0_2] : memref<9x128xbf16, #tpu.memory_space<vmem>>, vector<9x128xbf16>
    %cst = arith.constant dense<0.000000e+00> : vector<104x128xf32>
    %2 = tpu.matmul %0, %1, %cst {dimension_numbers = #tpu.dot_dimension_numbers<[1], [0], [0], [1], [0, 0, 1, 1], [], []>} : vector<104x9xbf16>, vector<9x128xbf16>, vector<104x128xf32> -> vector<104x128xf32>
    %c0_3 = arith.constant 0 : index
    %c0_4 = arith.constant 0 : index
    %3 = vector.load %arg3[%c0_3, %c0_4] : memref<1x128xf32, #tpu.memory_space<vmem>>, vector<1x128xf32>
    %4 = vector.broadcast %3 : vector<1x128xf32> to vector<104x128xf32>
    %5 = arith.addf %2, %4 : vector<104x128xf32>
    %cst_5 = arith.constant 0.000000e+00 : f32
    %6 = vector.broadcast %cst_5 : f32 to vector<104x128xf32>
    %7 = arith.maximumf %5, %6 : vector<104x128xf32>
    %8 = arith.truncf %7 : vector<104x128xf32> to vector<104x128xbf16>
    %c0_6 = arith.constant 0 : index
    %c0_7 = arith.constant 0 : index
    %9 = vector.load %arg4[%c0_6, %c0_7] : memref<104x128xbf16, #tpu.memory_space<vmem>>, vector<104x128xbf16>
    tpu.vector_store %arg4[%c0_6, %c0_7], %8 {strides = array<i32>} : memref<104x128xbf16, #tpu.memory_space<vmem>>, vector<104x128xbf16>,
    return
  }
  func.func @transform_0(%arg0: i32) -> (i32, i32) {
    %c0_i32 = arith.constant 0 : i32
    %c0_i32_0 = arith.constant 0 : i32
    return %arg0, %c0_i32 : i32, i32
  }
  func.func @transform_1(%arg0: i32) -> (i32, i32) {
    %c0_i32 = arith.constant 0 : i32
    %c0_i32_0 = arith.constant 0 : i32
    %c0_i32_1 = arith.constant 0 : i32
    return %c0_i32, %c0_i32_0 : i32, i32
  }
  func.func @transform_2(%arg0: i32) -> (i32, i32) {
    %c0_i32 = arith.constant 0 : i32
    %c0_i32_0 = arith.constant 0 : i32
    %c0_i32_1 = arith.constant 0 : i32
    return %c0_i32, %c0_i32_0 : i32, i32
  }
  func.func @transform_3(%arg0: i32) -> (i32, i32) {
    %c0_i32 = arith.constant 0 : i32
    %c0_i32_0 = arith.constant 0 : i32
    return %arg0, %c0_i32 : i32, i32
  }
}

module attributes {stable_mosaic.version = 11 : i64} {
  func.func @_mm_bias_act_kernel(%arg0: i32, %arg1: memref<24x288xbf16, #tpu.memory_space<vmem>>, %arg2: memref<288x128xbf16, #tpu.memory_space<vmem>>, %arg3: memref<1x128xf32, #tpu.memory_space<vmem>>, %arg4: memref<24x128xbf16, #tpu.memory_space<vmem>>) attributes {dimension_semantics = [#tpu.dimension_semantics<parallel>], iteration_bounds = array<i64: 1>, scalar_prefetch = 0 : i64, scratch_operands = 0 : i64, tpu.core_type = #tpu.core_type<tc>, window_params = [{transform_indices = @transform_0, window_bounds = array<i64: 24, 288>}, {pipeline_mode = #tpu.pipeline_mode<synchronous>, transform_indices = @transform_1, window_bounds = array<i64: 288, 128>}, {pipeline_mode = #tpu.pipeline_mode<synchronous>, transform_indices = @transform_2, window_bounds = array<i64: 1, 128>}, {transform_indices = @transform_3, window_bounds = array<i64: 24, 128>}]} {
    %c0 = arith.constant 0 : index
    %c0_0 = arith.constant 0 : index
    %0 = vector.load %arg1[%c0, %c0_0] : memref<24x288xbf16, #tpu.memory_space<vmem>>, vector<24x288xbf16>
    %c0_1 = arith.constant 0 : index
    %c0_2 = arith.constant 0 : index
    %1 = vector.load %arg2[%c0_1, %c0_2] : memref<288x128xbf16, #tpu.memory_space<vmem>>, vector<288x128xbf16>
    %cst = arith.constant dense<0.000000e+00> : vector<24x128xf32>
    %2 = tpu.matmul %0, %1, %cst {dimension_numbers = #tpu.dot_dimension_numbers<[1], [0], [0], [1], [0, 0, 1, 1], [], []>} : vector<24x288xbf16>, vector<288x128xbf16>, vector<24x128xf32> -> vector<24x128xf32>
    %c0_3 = arith.constant 0 : index
    %c0_4 = arith.constant 0 : index
    %3 = vector.load %arg3[%c0_3, %c0_4] : memref<1x128xf32, #tpu.memory_space<vmem>>, vector<1x128xf32>
    %4 = vector.broadcast %3 : vector<1x128xf32> to vector<24x128xf32>
    %5 = arith.addf %2, %4 : vector<24x128xf32>
    %cst_5 = arith.constant 0.000000e+00 : f32
    %6 = vector.broadcast %cst_5 : f32 to vector<24x128xf32>
    %7 = arith.maximumf %5, %6 : vector<24x128xf32>
    %8 = arith.truncf %7 : vector<24x128xf32> to vector<24x128xbf16>
    %c0_6 = arith.constant 0 : index
    %c0_7 = arith.constant 0 : index
    %9 = vector.load %arg4[%c0_6, %c0_7] : memref<24x128xbf16, #tpu.memory_space<vmem>>, vector<24x128xbf16>
    tpu.vector_store %arg4[%c0_6, %c0_7], %8 {strides = array<i32>} : memref<24x128xbf16, #tpu.memory_space<vmem>>, vector<24x128xbf16>,
    return
  }
  func.func @transform_0(%arg0: i32) -> (i32, i32) {
    %c0_i32 = arith.constant 0 : i32
    %c0_i32_0 = arith.constant 0 : i32
    return %arg0, %c0_i32 : i32, i32
  }
  func.func @transform_1(%arg0: i32) -> (i32, i32) {
    %c0_i32 = arith.constant 0 : i32
    %c0_i32_0 = arith.constant 0 : i32
    %c0_i32_1 = arith.constant 0 : i32
    return %c0_i32, %c0_i32_0 : i32, i32
  }
  func.func @transform_2(%arg0: i32) -> (i32, i32) {
    %c0_i32 = arith.constant 0 : i32
    %c0_i32_0 = arith.constant 0 : i32
    %c0_i32_1 = arith.constant 0 : i32
    return %c0_i32, %c0_i32_0 : i32, i32
  }
  func.func @transform_3(%arg0: i32) -> (i32, i32) {
    %c0_i32 = arith.constant 0 : i32
    %c0_i32_0 = arith.constant 0 : i32
    return %arg0, %c0_i32 : i32, i32
  }
}

module attributes {stable_mosaic.version = 11 : i64} {
  func.func @_mm_bias_act_kernel(%arg0: i32, %arg1: memref<8x96xbf16, #tpu.memory_space<vmem>>, %arg2: memref<96x128xbf16, #tpu.memory_space<vmem>>, %arg3: memref<1x128xf32, #tpu.memory_space<vmem>>, %arg4: memref<8x128xf32, #tpu.memory_space<vmem>>) attributes {dimension_semantics = [#tpu.dimension_semantics<parallel>], iteration_bounds = array<i64: 1>, scalar_prefetch = 0 : i64, scratch_operands = 0 : i64, tpu.core_type = #tpu.core_type<tc>, window_params = [{transform_indices = @transform_0, window_bounds = array<i64: 8, 96>}, {pipeline_mode = #tpu.pipeline_mode<synchronous>, transform_indices = @transform_1, window_bounds = array<i64: 96, 128>}, {pipeline_mode = #tpu.pipeline_mode<synchronous>, transform_indices = @transform_2, window_bounds = array<i64: 1, 128>}, {transform_indices = @transform_3, window_bounds = array<i64: 8, 128>}]} {
    %c0 = arith.constant 0 : index
    %c0_0 = arith.constant 0 : index
    %0 = vector.load %arg1[%c0, %c0_0] : memref<8x96xbf16, #tpu.memory_space<vmem>>, vector<8x96xbf16>
    %c0_1 = arith.constant 0 : index
    %c0_2 = arith.constant 0 : index
    %1 = vector.load %arg2[%c0_1, %c0_2] : memref<96x128xbf16, #tpu.memory_space<vmem>>, vector<96x128xbf16>
    %cst = arith.constant dense<0.000000e+00> : vector<8x128xf32>
    %2 = tpu.matmul %0, %1, %cst {dimension_numbers = #tpu.dot_dimension_numbers<[1], [0], [0], [1], [0, 0, 1, 1], [], []>} : vector<8x96xbf16>, vector<96x128xbf16>, vector<8x128xf32> -> vector<8x128xf32>
    %c0_3 = arith.constant 0 : index
    %c0_4 = arith.constant 0 : index
    %3 = vector.load %arg3[%c0_3, %c0_4] : memref<1x128xf32, #tpu.memory_space<vmem>>, vector<1x128xf32>
    %4 = vector.broadcast %3 : vector<1x128xf32> to vector<8x128xf32>
    %5 = arith.addf %2, %4 : vector<8x128xf32>
    %c0_5 = arith.constant 0 : index
    %c0_6 = arith.constant 0 : index
    %6 = vector.load %arg4[%c0_5, %c0_6] : memref<8x128xf32, #tpu.memory_space<vmem>>, vector<8x128xf32>
    tpu.vector_store %arg4[%c0_5, %c0_6], %5 {strides = array<i32>} : memref<8x128xf32, #tpu.memory_space<vmem>>, vector<8x128xf32>,
    return
  }
  func.func @transform_0(%arg0: i32) -> (i32, i32) {
    %c0_i32 = arith.constant 0 : i32
    %c0_i32_0 = arith.constant 0 : i32
    return %arg0, %c0_i32 : i32, i32
  }
  func.func @transform_1(%arg0: i32) -> (i32, i32) {
    %c0_i32 = arith.constant 0 : i32
    %c0_i32_0 = arith.constant 0 : i32
    %c0_i32_1 = arith.constant 0 : i32
    return %c0_i32, %c0_i32_0 : i32, i32
  }
  func.func @transform_2(%arg0: i32) -> (i32, i32) {
    %c0_i32 = arith.constant 0 : i32
    %c0_i32_0 = arith.constant 0 : i32
    %c0_i32_1 = arith.constant 0 : i32
    return %c0_i32, %c0_i32_0 : i32, i32
  }
  func.func @transform_3(%arg0: i32) -> (i32, i32) {
    %c0_i32 = arith.constant 0 : i32
    %c0_i32_0 = arith.constant 0 : i32
    return %arg0, %c0_i32 : i32, i32
  }
}

</mosaic_0001>

<llo_original>
// kernel: conv2d_subsampling_forward.3
$region0: #{conv2d_subsampling_forward.3}
  #allocation0 [shape = 'u32[]', space=smem, size = 0x4, offset = 0x4, fixed_abs, tag = 'smem constant byte address 0x4 - core index']
  #allocation1 [shape = 'u32[144,128]{1,0:T(1,128)}', space=vmem, size = 0x12000, scoped, tag = 'internal scratch']
  %s0 = inlined_call_operand.vmem [shape: bf16[104,9], index: 0, kind: input, shape index: {}]
  %s1 = inlined_call_operand.vmem [shape: bf16[9,128], index: 1, kind: input, shape index: {}]
  %s2 = inlined_call_operand.vmem [shape: f32[1,128], index: 2, kind: input, shape index: {}]
  %s3 = inlined_call_operand.vmem [shape: bf16[104,128], index: 3, kind: output, shape index: {}]
  %s4 = sld [smem:[#allocation0]]
  $region22: #{conv2d_subsampling_forward.3} parent=0
    _
  %s6 = ssub.s32 1, %s4
  %s7 = scalar_select 0, %s6, %s4
  // Predicated region
  $region2: #{conv2d_subsampling_forward.3} parent=0 // pred_check
    _
  $region3: #{conv2d_subsampling_forward.3} parent=0 // pred_check_branch
    %9 = sbr.rel (0) target = $region5
  $region4: #{conv2d_subsampling_forward.3} parent=0 // pred_region
    _
  $region5: #{conv2d_subsampling_forward.3} parent=0 // pred_fallthru
    _
  // Predicated region
  $region6: #{conv2d_subsampling_forward.3} parent=0 // pred_check
    _
  $region7: #{conv2d_subsampling_forward.3} parent=0 // pred_check_branch
    %11 = sbr.rel (0) target = $region9
  $region8: #{conv2d_subsampling_forward.3} parent=0 // pred_region
    _
  $region9: #{conv2d_subsampling_forward.3} parent=0 // pred_fallthru
    _
  // Predicated region
  $region10: #{conv2d_subsampling_forward.3} parent=0 // pred_check
    _
  $region11: #{conv2d_subsampling_forward.3} parent=0 // pred_check_branch
    %13 = sbr.rel (0) target = $region13
  $region12: #{conv2d_subsampling_forward.3} parent=0 // pred_region
    _
  $region13: #{conv2d_subsampling_forward.3} parent=0 // pred_fallthru
    _
  %v15 = vld [vmem:[%s0] sm:$0xf]
  %v16 = vld [vmem:[%s0 + $0x4] sm:$0xf]
  %v17 = vld [vmem:[%s0 + $0x8] sm:$0xf]
  %v18 = vld [vmem:[%s0 + $0xc] sm:$0xf]
  %v19 = vld [vmem:[%s0 + $0x10] sm:$0xf]
  %v20 = vld [vmem:[%s0 + $0x14] sm:$0xf]
  %v21 = vld [vmem:[%s0 + $0x18] sm:$0xf]
  %v22 = vld [vmem:[%s0 + $0x1c] sm:$0xf]
  %v23 = vld [vmem:[%s0 + $0x20] sm:$0xf]
  %v24 = vld [vmem:[%s0 + $0x24] sm:$0xf]
  %v25 = vld [vmem:[%s0 + $0x28] sm:$0xf]
  %v26 = vld [vmem:[%s0 + $0x2c] sm:$0xf]
  %v27 = vld [vmem:[%s0 + $0x30] sm:$0xf]
  %v28 = vld [vmem:[%s1] sm:$0xf]
  %v29 = vld [vmem:[%s1 + $0x4] sm:$0x1]
  %v30 = vld [vmem:[%s2] sm:$0x1]
  %v32 = vlaneseq
  %v33 = vshrl.u32 %v32, 7
  %v34 = vsub.s32 0, %v33
  %v35 = vrot.slane %v30, %v34
  %v50 = vunpack.c.l.b16 %v15
  %v51 = vunpack.c.l.b16 %v16
  %v52 = vunpack.c.l.b16 %v17
  %v53 = vunpack.c.l.b16 %v18
  %v54 = vunpack.c.l.b16 %v19
  %v55 = vunpack.c.l.b16 %v20
  %v56 = vunpack.c.l.b16 %v21
  %v57 = vunpack.c.l.b16 %v22
  %v58 = vunpack.c.l.b16 %v23
  %v59 = vunpack.c.l.b16 %v24
  %v60 = vunpack.c.l.b16 %v25
  %v61 = vunpack.c.l.b16 %v26
  %v62 = vunpack.c.l.b16 %v27
  %v63 = vpack.c.b16 %v51, %v50
  %v64 = vpack.c.b16 %v53, %v52
  %v65 = vpack.c.b16 %v55, %v54
  %v66 = vpack.c.b16 %v57, %v56
  %v67 = vpack.c.b16 %v59, %v58
  %v68 = vpack.c.b16 %v61, %v60
  %v69 = vpack.c.b16 %v62, %v62
  %v72 = vunpack.c.l.b16 %v28
  %v73 = vunpack.c.l.b16 %v29
  %v74 = vpack.c.b16 %v73, %v72
  %vm75 = vcmask 72704
  %v77 = vsel %vm75, %v63, 0
  %v80 = vsel %vm75, %v64, 0
  %v83 = vsel %vm75, %v65, 0
  %v86 = vsel %vm75, %v66, 0
  %v89 = vsel %vm75, %v67, 0
  %v92 = vsel %vm75, %v68, 0
  %v95 = vsel %vm75, %v69, 0
  %vm97 = vcmask 1043456
  %vm98 = vcmask 1044480
  %v99 = vsel %vm97, 4294967295, 65535
  %v100 = vsel %vm98, %v99, 0
  %v102 = vand.u32 %v74, %v100
  %104 = vmatprep.subr.bf16.mxu0 0
  %105 = vmatpush1.bf16.msra.mxu0 %v102
  %106 = vmatprep.subr.bf16.mxu0 0
  %107 = vmatpush1.bf16.msra.mxu0 0
  %108 = vmatprep.subr.bf16.mxu0 0
  %109 = vmatpush1.bf16.msra.mxu0 0
  %110 = vmatprep.subr.bf16.mxu0 0
  %111 = vmatpush1.bf16.msra.mxu0 0
  %112 = vmatprep.subr.bf16.mxu0 0
  %113 = vmatpush1.bf16.msra.mxu0 0
  %114 = vmatprep.subr.bf16.mxu0 0
  %115 = vmatpush1.bf16.msra.mxu0 0
  %116 = vmatprep.subr.bf16.mxu0 0
  %117 = vmatpush1.bf16.msra.mxu0 0
  %118 = vmatprep.subr.bf16.mxu0 0
  %119 = vmatpush1.bf16.msra.mxu0 0
  %120 = vmatprep.subr.bf16.mxu0 0
  %121 = vmatpush1.bf16.msra.mxu0 0
  %122 = vmatprep.subr.bf16.mxu0 0
  %123 = vmatpush1.bf16.msra.mxu0 0
  %124 = vmatprep.subr.bf16.mxu0 0
  %125 = vmatpush1.bf16.msra.mxu0 0
  %126 = vmatprep.subr.bf16.mxu0 0
  %127 = vmatpush1.bf16.msra.mxu0 0
  %128 = vmatprep.subr.bf16.mxu0 0
  %129 = vmatpush1.bf16.msra.mxu0 0
  %130 = vmatprep.subr.bf16.mxu0 0
  %131 = vmatpush1.bf16.msra.mxu0 0
  %132 = vmatprep.subr.bf16.mxu0 0
  %133 = vmatpush1.bf16.msra.mxu0 0
  %134 = vmatprep.subr.bf16.mxu0 0
  %135 = vmatpush1.bf16.msra.mxu0 0
  %136 = vmatprep.mubr.bf16.mxu0 0
  %137 = vmatmul.mubr.bf16.gmra.mrb[0].mxu0 %v77
  %v138 = vpop.f32.mrb[0].mxu0
  %v139 = vadd.f32 %v35, %v138
  %v140 = vpop.f32.mrb[0].mxu0
  %v141 = vpop.f32.mrb[0].mxu0
  %v142 = vadd.f32 %v35, %v141
  %v143 = vpop.f32.mrb[0].mxu0
  %144 = vmatprep.mubr.bf16.mxu0 0
  %145 = vmatmul.mubr.bf16.gmra.mrb[0].mxu0 %v80
  %v146 = vpop.f32.mrb[0].mxu0
  %v147 = vadd.f32 %v35, %v146
  %v148 = vpop.f32.mrb[0].mxu0
  %v149 = vpop.f32.mrb[0].mxu0
  %v150 = vadd.f32 %v35, %v149
  %v151 = vpop.f32.mrb[0].mxu0
  %152 = vmatprep.mubr.bf16.mxu0 0
  %153 = vmatmul.mubr.bf16.gmra.mrb[0].mxu0 %v83
  %v154 = vpop.f32.mrb[0].mxu0
  %v155 = vadd.f32 %v35, %v154
  %v156 = vpop.f32.mrb[0].mxu0
  %v157 = vpop.f32.mrb[0].mxu0
  %v158 = vadd.f32 %v35, %v157
  %v159 = vpop.f32.mrb[0].mxu0
  %160 = vmatprep.mubr.bf16.mxu0 0
  %161 = vmatmul.mubr.bf16.gmra.mrb[0].mxu0 %v86
  %v162 = vpop.f32.mrb[0].mxu0
  %v163 = vadd.f32 %v35, %v162
  %v164 = vpop.f32.mrb[0].mxu0
  %v165 = vpop.f32.mrb[0].mxu0
  %v166 = vadd.f32 %v35, %v165
  %v167 = vpop.f32.mrb[0].mxu0
  %168 = vmatprep.mubr.bf16.mxu0 0
  %169 = vmatmul.mubr.bf16.gmra.mrb[0].mxu0 %v89
  %v170 = vpop.f32.mrb[0].mxu0
  %v171 = vadd.f32 %v35, %v170
  %v172 = vpop.f32.mrb[0].mxu0
  %v173 = vpop.f32.mrb[0].mxu0
  %v174 = vadd.f32 %v35, %v173
  %v175 = vpop.f32.mrb[0].mxu0
  %176 = vmatprep.mubr.bf16.mxu0 0
  %177 = vmatmul.mubr.bf16.gmra.mrb[0].mxu0 %v92
  %v178 = vpop.f32.mrb[0].mxu0
  %v179 = vadd.f32 %v35, %v178
  %v180 = vpop.f32.mrb[0].mxu0
  %v181 = vpop.f32.mrb[0].mxu0
  %v182 = vadd.f32 %v35, %v181
  %v183 = vpop.f32.mrb[0].mxu0
  %184 = vmatprep.mubr.bf16.mxu0 0
  %185 = vmatmul.mubr.bf16.gmra.mrb[0].mxu0 %v95
  %v186 = vpop.f32.mrb[0].mxu0
  %v187 = vadd.f32 %v35, %v186
  %v188 = vpop.f32.mrb[0].mxu0
  %v189 = vpop.f32.mrb[0].mxu0
  %v190 = vpop.f32.mrb[0].mxu0
  %191 = vdwg.mxu0
  %v192 = vmax.f32 %v139, 0.0
  %v193 = vmax.f32 %v142, 0.0
  %v194 = vmax.f32 %v147, 0.0
  %v195 = vmax.f32 %v150, 0.0
  %v196 = vmax.f32 %v155, 0.0
  %v197 = vmax.f32 %v158, 0.0
  %v198 = vmax.f32 %v163, 0.0
  %v199 = vmax.f32 %v166, 0.0
  %v200 = vmax.f32 %v171, 0.0
  %v201 = vmax.f32 %v174, 0.0
  %v202 = vmax.f32 %v179, 0.0
  %v203 = vmax.f32 %v182, 0.0
  %v204 = vmax.f32 %v187, 0.0
  %v205 = vpack.c.bf16 %v193, %v192
  %v206 = vpack.c.bf16 %v195, %v194
  %v207 = vpack.c.bf16 %v197, %v196
  %v208 = vpack.c.bf16 %v199, %v198
  %v209 = vpack.c.bf16 %v201, %v200
  %v210 = vpack.c.bf16 %v203, %v202
  %v211 = vpack.c.bf16 %v204, %v204
  %v219 = vunpack.c.l.b16 %v205
  %v220 = vunpack.c.h.b16 %v205
  %v221 = vunpack.c.l.b16 %v206
  %v222 = vunpack.c.h.b16 %v206
  %v223 = vunpack.c.l.b16 %v207
  %v224 = vunpack.c.h.b16 %v207
  %v225 = vunpack.c.l.b16 %v208
  %v226 = vunpack.c.h.b16 %v208
  %v227 = vunpack.c.l.b16 %v209
  %v228 = vunpack.c.h.b16 %v209
  %v229 = vunpack.c.l.b16 %v210
  %v230 = vunpack.c.h.b16 %v210
  %v231 = vunpack.c.l.b16 %v211
  %v232 = vpack.c.b16 %v219, %v219
  %v233 = vpack.c.b16 %v220, %v220
  %v234 = vpack.c.b16 %v221, %v221
  %v235 = vpack.c.b16 %v222, %v222
  %v236 = vpack.c.b16 %v223, %v223
  %v237 = vpack.c.b16 %v224, %v224
  %v238 = vpack.c.b16 %v225, %v225
  %v239 = vpack.c.b16 %v226, %v226
  %v240 = vpack.c.b16 %v227, %v227
  %v241 = vpack.c.b16 %v228, %v228
  %v242 = vpack.c.b16 %v229, %v229
  %v243 = vpack.c.b16 %v230, %v230
  %v244 = vpack.c.b16 %v231, %v231
  %258 = vst [vmem:[%s3] sm:$0xf] %v232
  %259 = vst [vmem:[%s3 + $0x4] sm:$0xf] %v233
  %260 = vst [vmem:[%s3 + $0x8] sm:$0xf] %v234
  %261 = vst [vmem:[%s3 + $0xc] sm:$0xf] %v235
  %262 = vst [vmem:[%s3 + $0x10] sm:$0xf] %v236
  %263 = vst [vmem:[%s3 + $0x14] sm:$0xf] %v237
  %264 = vst [vmem:[%s3 + $0x18] sm:$0xf] %v238
  %265 = vst [vmem:[%s3 + $0x1c] sm:$0xf] %v239
  %266 = vst [vmem:[%s3 + $0x20] sm:$0xf] %v240
  %267 = vst [vmem:[%s3 + $0x24] sm:$0xf] %v241
  %268 = vst [vmem:[%s3 + $0x28] sm:$0xf] %v242
  %269 = vst [vmem:[%s3 + $0x2c] sm:$0xf] %v243
  %270 = vst [vmem:[%s3 + $0x30] sm:$0xf] %v244
  // Predicated region
  $region14: #{conv2d_subsampling_forward.3} parent=0 // pred_check
    _
  $region15: #{conv2d_subsampling_forward.3} parent=0 // pred_check_branch
    %272 = sbr.rel (0) target = $region17
  $region16: #{conv2d_subsampling_forward.3} parent=0 // pred_region
    _
  $region17: #{conv2d_subsampling_forward.3} parent=0 // pred_fallthru
    _
  // Predicated region
  $region18: #{conv2d_subsampling_forward.3} parent=0 // pred_check
    _
  $region19: #{conv2d_subsampling_forward.3} parent=0 // pred_check_branch
    %274 = sbr.rel (0) target = $region21
  $region20: #{conv2d_subsampling_forward.3} parent=0 // pred_region
    _
  $region21: #{conv2d_subsampling_forward.3} parent=0 // pred_fallthru
    _

// kernel: conv2d_subsampling_forward.4
$region0: #{conv2d_subsampling_forward.4}
  #allocation0 [shape = 'u32[]', space=smem, size = 0x4, offset = 0x4, fixed_abs, tag = 'smem constant byte address 0x4 - core index']
  #allocation1 [shape = 'u32[144,128]{1,0:T(1,128)}', space=vmem, size = 0x12000, scoped, tag = 'internal scratch']
  %s0 = inlined_call_operand.vmem [shape: bf16[24,288], index: 0, kind: input, shape index: {}]
  %s1 = inlined_call_operand.vmem [shape: bf16[288,128], index: 1, kind: input, shape index: {}]
  %s2 = inlined_call_operand.vmem [shape: f32[1,128], index: 2, kind: input, shape index: {}]
  %s3 = inlined_call_operand.vmem [shape: bf16[24,128], index: 3, kind: output, shape index: {}]
  %s4 = sld [smem:[#allocation0]]
  $region22: #{conv2d_subsampling_forward.4} parent=0
    _
  %s6 = ssub.s32 1, %s4
  %s7 = scalar_select 0, %s6, %s4
  // Predicated region
  $region2: #{conv2d_subsampling_forward.4} parent=0 // pred_check
    _
  $region3: #{conv2d_subsampling_forward.4} parent=0 // pred_check_branch
    %9 = sbr.rel (0) target = $region5
  $region4: #{conv2d_subsampling_forward.4} parent=0 // pred_region
    _
  $region5: #{conv2d_subsampling_forward.4} parent=0 // pred_fallthru
    _
  // Predicated region
  $region6: #{conv2d_subsampling_forward.4} parent=0 // pred_check
    _
  $region7: #{conv2d_subsampling_forward.4} parent=0 // pred_check_branch
    %11 = sbr.rel (0) target = $region9
  $region8: #{conv2d_subsampling_forward.4} parent=0 // pred_region
    _
  $region9: #{conv2d_subsampling_forward.4} parent=0 // pred_fallthru
    _
  // Predicated region
  $region10: #{conv2d_subsampling_forward.4} parent=0 // pred_check
    _
  $region11: #{conv2d_subsampling_forward.4} parent=0 // pred_check_branch
    %13 = sbr.rel (0) target = $region13
  $region12: #{conv2d_subsampling_forward.4} parent=0 // pred_region
    _
  $region13: #{conv2d_subsampling_forward.4} parent=0 // pred_fallthru
    _
  %v15 = vld [vmem:[%s0] sm:$0xff]
  %v16 = vld [vmem:[%s0 + $0x8] sm:$0xf]
  %v17 = vld [vmem:[%s0 + $0xc] sm:$0xff]
  %v18 = vld [vmem:[%s0 + $0x14] sm:$0xf]
  %v19 = vld [vmem:[%s0 + $0x18] sm:$0xff]
  %v20 = vld [vmem:[%s0 + $0x20] sm:$0xf]
  %v21 = vld [vmem:[%s1] sm:$0xf]
  %v22 = vld [vmem:[%s1 + $0x4] sm:$0xf]
  %v23 = vld [vmem:[%s1 + $0x8] sm:$0xf]
  %v24 = vld [vmem:[%s1 + $0xc] sm:$0xf]
  %v25 = vld [vmem:[%s1 + $0x10] sm:$0xf]
  %v26 = vld [vmem:[%s1 + $0x14] sm:$0xf]
  %v27 = vld [vmem:[%s1 + $0x18] sm:$0xf]
  %v28 = vld [vmem:[%s1 + $0x1c] sm:$0xf]
  %v29 = vld [vmem:[%s1 + $0x20] sm:$0xf]
  %v30 = vld [vmem:[%s1 + $0x24] sm:$0xf]
  %v31 = vld [vmem:[%s1 + $0x28] sm:$0xf]
  %v32 = vld [vmem:[%s1 + $0x2c] sm:$0xf]
  %v33 = vld [vmem:[%s1 + $0x30] sm:$0xf]
  %v34 = vld [vmem:[%s1 + $0x34] sm:$0xf]
  %v35 = vld [vmem:[%s1 + $0x38] sm:$0xf]
  %v36 = vld [vmem:[%s1 + $0x3c] sm:$0xf]
  %v37 = vld [vmem:[%s1 + $0x40] sm:$0xf]
  %v38 = vld [vmem:[%s1 + $0x44] sm:$0xf]
  %v39 = vld [vmem:[%s1 + $0x48] sm:$0xf]
  %v40 = vld [vmem:[%s1 + $0x4c] sm:$0xf]
  %v41 = vld [vmem:[%s1 + $0x50] sm:$0xf]
  %v42 = vld [vmem:[%s1 + $0x54] sm:$0xf]
  %v43 = vld [vmem:[%s1 + $0x58] sm:$0xf]
  %v44 = vld [vmem:[%s1 + $0x5c] sm:$0xf]
  %v45 = vld [vmem:[%s1 + $0x60] sm:$0xf]
  %v46 = vld [vmem:[%s1 + $0x64] sm:$0xf]
  %v47 = vld [vmem:[%s1 + $0x68] sm:$0xf]
  %v48 = vld [vmem:[%s1 + $0x6c] sm:$0xf]
  %v49 = vld [vmem:[%s1 + $0x70] sm:$0xf]
  %v50 = vld [vmem:[%s1 + $0x74] sm:$0xf]
  %v51 = vld [vmem:[%s1 + $0x78] sm:$0xf]
  %v52 = vld [vmem:[%s1 + $0x7c] sm:$0xf]
  %v53 = vld [vmem:[%s1 + $0x80] sm:$0xf]
  %v54 = vld [vmem:[%s1 + $0x84] sm:$0xf]
  %v55 = vld [vmem:[%s1 + $0x88] sm:$0xf]
  %v56 = vld [vmem:[%s1 + $0x8c] sm:$0xf]
  %v57 = vld [vmem:[%s2] sm:$0x1]
  %v59 = vlaneseq
  %v60 = vshrl.u32 %v59, 7
  %v61 = vsub.s32 0, %v60
  %v62 = vrot.slane %v57, %v61
  %v70 = vunpack.c.l.b16 %v15
  %v71 = vunpack.c.h.b16 %v15
  %v72 = vunpack.c.l.b16 %v16
  %v73 = vunpack.c.l.b16 %v17
  %v74 = vunpack.c.h.b16 %v17
  %v75 = vunpack.c.l.b16 %v18
  %v76 = vunpack.c.l.b16 %v19
  %v77 = vunpack.c.h.b16 %v19
  %v78 = vunpack.c.l.b16 %v20
  %v79 = vpack.c.b16 %v73, %v70
  %v80 = vpack.c.b16 %v74, %v71
  %v81 = vpack.c.b16 %v75, %v72
  %v82 = vpack.c.b16 %v76, %v76
  %v83 = vpack.c.b16 %v77, %v77
  %v84 = vpack.c.b16 %v78, %v78
  %v125 = vunpack.c.l.b16 %v21
  %v126 = vunpack.c.l.b16 %v22
  %v127 = vunpack.c.l.b16 %v23
  %v128 = vunpack.c.l.b16 %v24
  %v129 = vunpack.c.l.b16 %v25
  %v130 = vunpack.c.l.b16 %v26
  %v131 = vunpack.c.l.b16 %v27
  %v132 = vunpack.c.l.b16 %v28
  %v133 = vunpack.c.l.b16 %v29
  %v134 = vunpack.c.l.b16 %v30
  %v135 = vunpack.c.l.b16 %v31
  %v136 = vunpack.c.l.b16 %v32
  %v137 = vunpack.c.l.b16 %v33
  %v138 = vunpack.c.l.b16 %v34
  %v139 = vunpack.c.l.b16 %v35
  %v140 = vunpack.c.l.b16 %v36
  %v141 = vunpack.c.l.b16 %v37
  %v142 = vunpack.c.l.b16 %v38
  %v143 = vunpack.c.l.b16 %v39
  %v144 = vunpack.c.l.b16 %v40
  %v145 = vunpack.c.l.b16 %v41
  %v146 = vunpack.c.l.b16 %v42
  %v147 = vunpack.c.l.b16 %v43
  %v148 = vunpack.c.l.b16 %v44
  %v149 = vunpack.c.l.b16 %v45
  %v150 = vunpack.c.l.b16 %v46
  %v151 = vunpack.c.l.b16 %v47
  %v152 = vunpack.c.l.b16 %v48
  %v153 = vunpack.c.l.b16 %v49
  %v154 = vunpack.c.l.b16 %v50
  %v155 = vunpack.c.l.b16 %v51
  %v156 = vunpack.c.l.b16 %v52
  %v157 = vunpack.c.l.b16 %v53
  %v158 = vunpack.c.l.b16 %v54
  %v159 = vunpack.c.l.b16 %v55
  %v160 = vunpack.c.l.b16 %v56
  %v161 = vpack.c.b16 %v126, %v125
  %v162 = vpack.c.b16 %v128, %v127
  %v163 = vpack.c.b16 %v130, %v129
  %v164 = vpack.c.b16 %v132, %v131
  %v165 = vpack.c.b16 %v134, %v133
  %v166 = vpack.c.b16 %v136, %v135
  %v167 = vpack.c.b16 %v138, %v137
  %v168 = vpack.c.b16 %v140, %v139
  %v169 = vpack.c.b16 %v142, %v141
  %v170 = vpack.c.b16 %v144, %v143
  %v171 = vpack.c.b16 %v146, %v145
  %v172 = vpack.c.b16 %v148, %v147
  %v173 = vpack.c.b16 %v150, %v149
  %v174 = vpack.c.b16 %v152, %v151
  %v175 = vpack.c.b16 %v154, %v153
  %v176 = vpack.c.b16 %v156, %v155
  %v177 = vpack.c.b16 %v158, %v157
  %v178 = vpack.c.b16 %v160, %v159
  %vm197 = vcmask 261120
  %v199 = vsel %vm197, %v81, 0
  %v202 = vsel %vm197, %v84, 0
  %204 = vmatprep.subr.bf16.mxu0 0
  %205 = vmatpush1.bf16.msra.mxu0 %v161
  %206 = vmatprep.subr.bf16.mxu0 0
  %207 = vmatpush1.bf16.msra.mxu0 %v162
  %208 = vmatprep.subr.bf16.mxu0 0
  %209 = vmatpush1.bf16.msra.mxu0 %v163
  %210 = vmatprep.subr.bf16.mxu0 0
  %211 = vmatpush1.bf16.msra.mxu0 %v164
  %212 = vmatprep.subr.bf16.mxu0 0
  %213 = vmatpush1.bf16.msra.mxu0 %v165
  %214 = vmatprep.subr.bf16.mxu0 0
  %215 = vmatpush1.bf16.msra.mxu0 %v166
  %216 = vmatprep.subr.bf16.mxu0 0
  %217 = vmatpush1.bf16.msra.mxu0 %v167
  %218 = vmatprep.subr.bf16.mxu0 0
  %219 = vmatpush1.bf16.msra.mxu0 %v168
  %220 = vmatprep.subr.bf16.mxu0 0
  %221 = vmatpush1.bf16.msra.mxu0 %v169
  %222 = vmatprep.subr.bf16.mxu0 0
  %223 = vmatpush1.bf16.msra.mxu0 %v170
  %224 = vmatprep.subr.bf16.mxu0 0
  %225 = vmatpush1.bf16.msra.mxu0 %v171
  %226 = vmatprep.subr.bf16.mxu0 0
  %227 = vmatpush1.bf16.msra.mxu0 %v172
  %228 = vmatprep.subr.bf16.mxu0 0
  %229 = vmatpush1.bf16.msra.mxu0 %v173
  %230 = vmatprep.subr.bf16.mxu0 0
  %231 = vmatpush1.bf16.msra.mxu0 %v174
  %232 = vmatprep.subr.bf16.mxu0 0
  %233 = vmatpush1.bf16.msra.mxu0 %v175
  %234 = vmatprep.subr.bf16.mxu0 0
  %235 = vmatpush1.bf16.msra.mxu0 %v176
  %236 = vmatprep.mubr.bf16.mxu0 %v80
  %237 = vmatmul.mubr.bf16.gmra.mrb[0].mxu0 %v79
  %v238 = vpop.f32.mrb[0].mxu0
  %v239 = vadd.f32 %v62, %v238
  %v240 = vpop.f32.mrb[0].mxu0
  %v241 = vpop.f32.mrb[0].mxu0
  %v242 = vadd.f32 %v62, %v241
  %v243 = vpop.f32.mrb[0].mxu0
  %244 = vmatprep.mubr.bf16.mxu0 %v83
  %245 = vmatmul.mubr.bf16.gmra.mrb[0].mxu0 %v82
  %v246 = vpop.f32.mrb[0].mxu0
  %v247 = vadd.f32 %v62, %v246
  %v248 = vpop.f32.mrb[0].mxu0
  %v249 = vpop.f32.mrb[0].mxu0
  %v250 = vpop.f32.mrb[0].mxu0
  %251 = vdwg.mxu0
  %252 = vmatprep.subr.bf16.mxu0 0
  %253 = vmatpush1.bf16.msra.mxu0 %v177
  %254 = vmatprep.subr.bf16.mxu0 0
  %255 = vmatpush1.bf16.msra.mxu0 %v178
  %256 = vmatprep.subr.bf16.mxu0 0
  %257 = vmatpush1.bf16.msra.mxu0 0
  %258 = vmatprep.subr.bf16.mxu0 0
  %259 = vmatpush1.bf16.msra.mxu0 0
  %260 = vmatprep.subr.bf16.mxu0 0
  %261 = vmatpush1.bf16.msra.mxu0 0
  %262 = vmatprep.subr.bf16.mxu0 0
  %263 = vmatpush1.bf16.msra.mxu0 0
  %264 = vmatprep.subr.bf16.mxu0 0
  %265 = vmatpush1.bf16.msra.mxu0 0
  %266 = vmatprep.subr.bf16.mxu0 0
  %267 = vmatpush1.bf16.msra.mxu0 0
  %268 = vmatprep.subr.bf16.mxu0 0
  %269 = vmatpush1.bf16.msra.mxu0 0
  %270 = vmatprep.subr.bf16.mxu0 0
  %271 = vmatpush1.bf16.msra.mxu0 0
  %272 = vmatprep.subr.bf16.mxu0 0
  %273 = vmatpush1.bf16.msra.mxu0 0
  %274 = vmatprep.subr.bf16.mxu0 0
  %275 = vmatpush1.bf16.msra.mxu0 0
  %276 = vmatprep.subr.bf16.mxu0 0
  %277 = vmatpush1.bf16.msra.mxu0 0
  %278 = vmatprep.subr.bf16.mxu0 0
  %279 = vmatpush1.bf16.msra.mxu0 0
  %280 = vmatprep.subr.bf16.mxu0 0
  %281 = vmatpush1.bf16.msra.mxu0 0
  %282 = vmatprep.subr.bf16.mxu0 0
  %283 = vmatpush1.bf16.msra.mxu0 0
  %284 = vmatprep.mubr.bf16.mxu0 0
  %285 = vmatmul.mubr.bf16.gmra.mrb[0].mxu0 %v199
  %v286 = vpop.f32.mrb[0].mxu0
  %v287 = vadd.f32 %v239, %v286
  %v288 = vpop.f32.mrb[0].mxu0
  %v289 = vpop.f32.mrb[0].mxu0
  %v290 = vadd.f32 %v242, %v289
  %v291 = vpop.f32.mrb[0].mxu0
  %292 = vmatprep.mubr.bf16.mxu0 0
  %293 = vmatmul.mubr.bf16.gmra.mrb[0].mxu0 %v202
  %v294 = vpop.f32.mrb[0].mxu0
  %v295 = vadd.f32 %v247, %v294
  %v296 = vpop.f32.mrb[0].mxu0
  %v297 = vpop.f32.mrb[0].mxu0
  %v298 = vpop.f32.mrb[0].mxu0
  %299 = vdwg.mxu0
  %v300 = vmax.f32 %v287, 0.0
  %v301 = vmax.f32 %v290, 0.0
  %v302 = vmax.f32 %v295, 0.0
  %v303 = vpack.c.bf16 %v301, %v300
  %v304 = vpack.c.bf16 %v302, %v302
  %v307 = vunpack.c.l.b16 %v303
  %v308 = vunpack.c.h.b16 %v303
  %v309 = vunpack.c.l.b16 %v304
  %v310 = vpack.c.b16 %v307, %v307
  %v311 = vpack.c.b16 %v308, %v308
  %v312 = vpack.c.b16 %v309, %v309
  %316 = vst [vmem:[%s3] sm:$0xf] %v310
  %317 = vst [vmem:[%s3 + $0x4] sm:$0xf] %v311
  %318 = vst [vmem:[%s3 + $0x8] sm:$0xf] %v312
  // Predicated region
  $region14: #{conv2d_subsampling_forward.4} parent=0 // pred_check
    _
  $region15: #{conv2d_subsampling_forward.4} parent=0 // pred_check_branch
    %320 = sbr.rel (0) target = $region17
  $region16: #{conv2d_subsampling_forward.4} parent=0 // pred_region
    _
  $region17: #{conv2d_subsampling_forward.4} parent=0 // pred_fallthru
    _
  // Predicated region
  $region18: #{conv2d_subsampling_forward.4} parent=0 // pred_check
    _
  $region19: #{conv2d_subsampling_forward.4} parent=0 // pred_check_branch
    %322 = sbr.rel (0) target = $region21
  $region20: #{conv2d_subsampling_forward.4} parent=0 // pred_region
    _
  $region21: #{conv2d_subsampling_forward.4} parent=0 // pred_fallthru
    _

// kernel: conv2d_subsampling_forward.5
$region0: #{conv2d_subsampling_forward.5}
  #allocation0 [shape = 'u32[]', space=smem, size = 0x4, offset = 0x4, fixed_abs, tag = 'smem constant byte address 0x4 - core index']
  #allocation1 [shape = 'u32[144,128]{1,0:T(1,128)}', space=vmem, size = 0x12000, scoped, tag = 'internal scratch']
  %s0 = inlined_call_operand.vmem [shape: bf16[8,96], index: 0, kind: input, shape index: {}]
  %s1 = inlined_call_operand.vmem [shape: bf16[96,128], index: 1, kind: input, shape index: {}]
  %s2 = inlined_call_operand.vmem [shape: f32[1,128], index: 2, kind: input, shape index: {}]
  %s3 = inlined_call_operand.vmem [shape: f32[8,128], index: 3, kind: output, shape index: {}]
  %s4 = sld [smem:[#allocation0]]
  $region22: #{conv2d_subsampling_forward.5} parent=0
    _
  %s6 = ssub.s32 1, %s4
  %s7 = scalar_select 0, %s6, %s4
  // Predicated region
  $region2: #{conv2d_subsampling_forward.5} parent=0 // pred_check
    _
  $region3: #{conv2d_subsampling_forward.5} parent=0 // pred_check_branch
    %9 = sbr.rel (0) target = $region5
  $region4: #{conv2d_subsampling_forward.5} parent=0 // pred_region
    _
  $region5: #{conv2d_subsampling_forward.5} parent=0 // pred_fallthru
    _
  // Predicated region
  $region6: #{conv2d_subsampling_forward.5} parent=0 // pred_check
    _
  $region7: #{conv2d_subsampling_forward.5} parent=0 // pred_check_branch
    %11 = sbr.rel (0) target = $region9
  $region8: #{conv2d_subsampling_forward.5} parent=0 // pred_region
    _
  $region9: #{conv2d_subsampling_forward.5} parent=0 // pred_fallthru
    _
  // Predicated region
  $region10: #{conv2d_subsampling_forward.5} parent=0 // pred_check
    _
  $region11: #{conv2d_subsampling_forward.5} parent=0 // pred_check_branch
    %13 = sbr.rel (0) target = $region13
  $region12: #{conv2d_subsampling_forward.5} parent=0 // pred_region
    _
  $region13: #{conv2d_subsampling_forward.5} parent=0 // pred_fallthru
    _
  %v15 = vld [vmem:[%s0] sm:$0xf]
  %v16 = vld [vmem:[%s1] sm:$0xf]
  %v17 = vld [vmem:[%s1 + $0x4] sm:$0xf]
  %v18 = vld [vmem:[%s1 + $0x8] sm:$0xf]
  %v19 = vld [vmem:[%s1 + $0xc] sm:$0xf]
  %v20 = vld [vmem:[%s1 + $0x10] sm:$0xf]
  %v21 = vld [vmem:[%s1 + $0x14] sm:$0xf]
  %v22 = vld [vmem:[%s1 + $0x18] sm:$0xf]
  %v23 = vld [vmem:[%s1 + $0x1c] sm:$0xf]
  %v24 = vld [vmem:[%s1 + $0x20] sm:$0xf]
  %v25 = vld [vmem:[%s1 + $0x24] sm:$0xf]
  %v26 = vld [vmem:[%s1 + $0x28] sm:$0xf]
  %v27 = vld [vmem:[%s1 + $0x2c] sm:$0xf]
  %v28 = vld [vmem:[%s2] sm:$0x1]
  %v30 = vlaneseq
  %v31 = vshrl.u32 %v30, 7
  %v32 = vsub.s32 0, %v31
  %v33 = vrot.slane %v28, %v32
  %v47 = vunpack.c.l.b16 %v16
  %v48 = vunpack.c.l.b16 %v17
  %v49 = vunpack.c.l.b16 %v18
  %v50 = vunpack.c.l.b16 %v19
  %v51 = vunpack.c.l.b16 %v20
  %v52 = vunpack.c.l.b16 %v21
  %v53 = vunpack.c.l.b16 %v22
  %v54 = vunpack.c.l.b16 %v23
  %v55 = vunpack.c.l.b16 %v24
  %v56 = vunpack.c.l.b16 %v25
  %v57 = vunpack.c.l.b16 %v26
  %v58 = vunpack.c.l.b16 %v27
  %v59 = vpack.c.b16 %v48, %v47
  %v60 = vpack.c.b16 %v50, %v49
  %v61 = vpack.c.b16 %v52, %v51
  %v62 = vpack.c.b16 %v54, %v53
  %v63 = vpack.c.b16 %v56, %v55
  %v64 = vpack.c.b16 %v58, %v57
  %vm71 = vcmask 785408
  %v73 = vsel %vm71, %v15, 0
  %75 = vmatprep.subr.bf16.mxu0 0
  %76 = vmatpush1.bf16.msra.mxu0 %v59
  %77 = vmatprep.subr.bf16.mxu0 0
  %78 = vmatpush1.bf16.msra.mxu0 %v60
  %79 = vmatprep.subr.bf16.mxu0 0
  %80 = vmatpush1.bf16.msra.mxu0 %v61
  %81 = vmatprep.subr.bf16.mxu0 0
  %82 = vmatpush1.bf16.msra.mxu0 %v62
  %83 = vmatprep.subr.bf16.mxu0 0
  %84 = vmatpush1.bf16.msra.mxu0 %v63
  %85 = vmatprep.subr.bf16.mxu0 0
  %86 = vmatpush1.bf16.msra.mxu0 %v64
  %87 = vmatprep.subr.bf16.mxu0 0
  %88 = vmatpush1.bf16.msra.mxu0 0
  %89 = vmatprep.subr.bf16.mxu0 0
  %90 = vmatpush1.bf16.msra.mxu0 0
  %91 = vmatprep.subr.bf16.mxu0 0
  %92 = vmatpush1.bf16.msra.mxu0 0
  %93 = vmatprep.subr.bf16.mxu0 0
  %94 = vmatpush1.bf16.msra.mxu0 0
  %95 = vmatprep.subr.bf16.mxu0 0
  %96 = vmatpush1.bf16.msra.mxu0 0
  %97 = vmatprep.subr.bf16.mxu0 0
  %98 = vmatpush1.bf16.msra.mxu0 0
  %99 = vmatprep.subr.bf16.mxu0 0
  %100 = vmatpush1.bf16.msra.mxu0 0
  %101 = vmatprep.subr.bf16.mxu0 0
  %102 = vmatpush1.bf16.msra.mxu0 0
  %103 = vmatprep.subr.bf16.mxu0 0
  %104 = vmatpush1.bf16.msra.mxu0 0
  %105 = vmatprep.subr.bf16.mxu0 0
  %106 = vmatpush1.bf16.msra.mxu0 0
  %107 = vmatprep.mubr.bf16.mxu0 0
  %108 = vmatmul.mubr.bf16.gmra.mrb[0].mxu0 %v73
  %v109 = vpop.f32.mrb[0].mxu0
  %v110 = vadd.f32 %v33, %v109
  %v111 = vpop.f32.mrb[0].mxu0
  %v112 = vpop.f32.mrb[0].mxu0
  %v113 = vpop.f32.mrb[0].mxu0
  %114 = vdwg.mxu0
  %115 = vst [vmem:[%s3] sm:$0xff] %v110
  // Predicated region
  $region14: #{conv2d_subsampling_forward.5} parent=0 // pred_check
    _
  $region15: #{conv2d_subsampling_forward.5} parent=0 // pred_check_branch
    %117 = sbr.rel (0) target = $region17
  $region16: #{conv2d_subsampling_forward.5} parent=0 // pred_region
    _
  $region17: #{conv2d_subsampling_forward.5} parent=0 // pred_fallthru
    _
  // Predicated region
  $region18: #{conv2d_subsampling_forward.5} parent=0 // pred_check
    _
  $region19: #{conv2d_subsampling_forward.5} parent=0 // pred_check_branch
    %119 = sbr.rel (0) target = $region21
  $region20: #{conv2d_subsampling_forward.5} parent=0 // pred_region
    _
  $region21: #{conv2d_subsampling_forward.5} parent=0 // pred_fallthru
    _

</llo_original>
